<compile_context>
chip_gen: v6e
topology: v6e:2x2x1
jax: 0.10.0
libtpu: 0.0.40
codegen_flags: <defaults>
</compile_context>

<pallas_src>
import functools

import jax
import jax.numpy as jnp
from jax.experimental import pallas as pl
from jax.experimental.pallas import tpu as pltpu


def _pe_kernel(row_ref, col_ref, out_ref):
    # row_ref: (TM, 1), col_ref: (1, TN) -> outer broadcast add -> (TM, TN)
    out_ref[...] = row_ref[...] + col_ref[...]


@functools.partial(jax.jit, static_argnames=("h", "w"))
def _compute_pe(row_weight, col_weight, *, h, w):
    dtype = row_weight.dtype

    # Tile sizes: either the full extent (always legal for BlockSpec) or a
    # lane/sublane-aligned tile (256 % 8 == 0, 512 % 128 == 0).  Interior
    # tiles store with unmasked, lane-dense vst; only the trailing partial
    # tile (if any) is masked.
    tm = h if h <= 256 else 256
    tn = w if w <= 512 else 512

    # Embedding(arange(n)) is just the first n rows of the table.
    row = row_weight[:h]                      # (h, 1)
    col = col_weight[:w].reshape(1, w)        # (1, w); width-1 reshape is layout-free

    out = pl.pallas_call(
        _pe_kernel,
        out_shape=jax.ShapeDtypeStruct((h, w), dtype),
        grid=(pl.cdiv(h, tm), pl.cdiv(w, tn)),
        in_specs=[
            # Row block index constant along j -> no re-DMA on the inner axis.
            pl.BlockSpec((tm, 1), lambda i, j: (i, 0)),
            pl.BlockSpec((1, tn), lambda i, j: (0, j)),
        ],
        out_specs=pl.BlockSpec((tm, tn), lambda i, j: (i, j)),
        compiler_params=pltpu.CompilerParams(
            dimension_semantics=("parallel", "parallel"),
        ),
    )(row, col)

    return out[None]  # (1, h, w)


def positional_encoding_learned(x, row_weight, col_weight):
    """Learned positional encoding for input x (NCHW). Returns (1, H, W)."""
    h, w = int(x.shape[-2]), int(x.shape[-1])
    return _compute_pe(row_weight, col_weight, h=h, w=w)


if __name__ == "__main__":
    key = jax.random.PRNGKey(0)
    k_x, k_row, k_col = jax.random.split(key, 3)

    # Small shapes consistent with the module's forward (NCHW input).
    batch, channels, H, W = 2, 4, 16, 16
    max_len = 64  # must be >= max(H, W); module default is 5000

    x = jax.random.normal(k_x, (batch, channels, H, W), dtype=jnp.float32)
    # nn.init.uniform_ -> U[0, 1)
    row_weight = jax.random.uniform(k_row, (max_len, 1), dtype=jnp.float32)
    col_weight = jax.random.uniform(k_col, (max_len, 1), dtype=jnp.float32)

    pe = positional_encoding_learned(x, row_weight, col_weight)
    pe = jax.block_until_ready(pe)

    # Pure-JAX reference check (same semantics as the PyTorch module).
    ref = (row_weight[:H] + jnp.transpose(col_weight[:W]))[None]
    assert pe.shape == (1, H, W), pe.shape
    assert jnp.allclose(pe, ref, atol=1e-6), "mismatch vs reference"

    print("KERNEL_OK")
</pallas_src>

<mosaic_0001>
module attributes {stable_mosaic.version = 11 : i64} {
  func.func @_pe_kernel(%arg0: i32, %arg1: i32, %arg2: memref<16x1xf32, #tpu.memory_space<vmem>>, %arg3: memref<1x16xf32, #tpu.memory_space<vmem>>, %arg4: memref<16x16xf32, #tpu.memory_space<vmem>>) attributes {dimension_semantics = [#tpu.dimension_semantics<parallel>, #tpu.dimension_semantics<parallel>], iteration_bounds = array<i64: 1, 1>, scalar_prefetch = 0 : i64, scratch_operands = 0 : i64, tpu.core_type = #tpu.core_type<tc>, window_params = [{transform_indices = @transform_0, window_bounds = array<i64: 16, 1>}, {transform_indices = @transform_1, window_bounds = array<i64: 1, 16>}, {transform_indices = @transform_2, window_bounds = array<i64: 16, 16>}]} {
    %c0 = arith.constant 0 : index
    %c0_0 = arith.constant 0 : index
    %0 = vector.load %arg2[%c0, %c0_0] : memref<16x1xf32, #tpu.memory_space<vmem>>, vector<16x1xf32>
    %c0_1 = arith.constant 0 : index
    %c0_2 = arith.constant 0 : index
    %1 = vector.load %arg3[%c0_1, %c0_2] : memref<1x16xf32, #tpu.memory_space<vmem>>, vector<1x16xf32>
    %2 = vector.broadcast %0 : vector<16x1xf32> to vector<16x16xf32>
    %3 = vector.broadcast %1 : vector<1x16xf32> to vector<16x16xf32>
    %4 = arith.addf %2, %3 : vector<16x16xf32>
    %c0_3 = arith.constant 0 : index
    %c0_4 = arith.constant 0 : index
    %5 = vector.load %arg4[%c0_3, %c0_4] : memref<16x16xf32, #tpu.memory_space<vmem>>, vector<16x16xf32>
    tpu.vector_store %arg4[%c0_3, %c0_4], %4 {strides = array<i32>} : memref<16x16xf32, #tpu.memory_space<vmem>>, vector<16x16xf32>,
    return
  }
  func.func @transform_0(%arg0: i32, %arg1: i32) -> (i32, i32) {
    %c0_i32 = arith.constant 0 : i32
    %c0_i32_0 = arith.constant 0 : i32
    return %arg0, %c0_i32 : i32, i32
  }
  func.func @transform_1(%arg0: i32, %arg1: i32) -> (i32, i32) {
    %c0_i32 = arith.constant 0 : i32
    %c0_i32_0 = arith.constant 0 : i32
    return %c0_i32, %arg1 : i32, i32
  }
  func.func @transform_2(%arg0: i32, %arg1: i32) -> (i32, i32) {
    %c0_i32 = arith.constant 0 : i32
    return %arg0, %arg1 : i32, i32
  }
}

</mosaic_0001>

<llo_original>
// kernel: _compute_pe.1
$region0: #{_compute_pe.1}
  #allocation0 [shape = 'u32[]', space=smem, size = 0x4, offset = 0x4, fixed_abs, tag = 'smem constant byte address 0x4 - core index']
  #allocation1 [shape = 'u32[144,128]{1,0:T(1,128)}', space=vmem, size = 0x12000, scoped, tag = 'internal scratch']
  %s0 = inlined_call_operand.vmem [shape: f32[16,1], index: 0, kind: input, shape index: {}]
  %s1 = inlined_call_operand.vmem [shape: f32[1,16], index: 1, kind: input, shape index: {}]
  %s2 = inlined_call_operand.hbm [shape: f32[16,16], index: 2, kind: output, shape index: {}]
  %s3 = sld [smem:[#allocation0]]
  $region18: #{_compute_pe.1} parent=0
    _
  %s5 = ssub.s32 1, %s3
  %s6 = scalar_select 0, %s5, %s3
  $region1: #{_compute_pe.1} parent=0
    #allocation2 [shape = 'u8[8192]{0}', space=vmem, size = 0x2000, scoped, tag = 'output window, operand 0, single buffered']
    #allocation3 [shape = 's32[1]{0}', space=sflag, size = 0x4, scoped, tag = 'scoped memory for _compute_pe.1']
    %7 = vsyncpa [#allocation3], 0
    // Predicated region
    $region2: #{_compute_pe.1} parent=1 // pred_check
      _
    $region3: #{_compute_pe.1} parent=1 // pred_check_branch
      %9 = sbr.rel (0) target = $region5
    $region4: #{_compute_pe.1} parent=1 // pred_region
      _
    $region5: #{_compute_pe.1} parent=1 // pred_fallthru
      _
    // Predicated region
    $region6: #{_compute_pe.1} parent=1 // pred_check
      _
    $region7: #{_compute_pe.1} parent=1 // pred_check_branch
      %11 = sbr.rel (0) target = $region9
    $region8: #{_compute_pe.1} parent=1 // pred_region
      _
    $region9: #{_compute_pe.1} parent=1 // pred_fallthru
      _
    %v12 = vld [vmem:[%s0] sm:$0xff]
    %v13 = vld [vmem:[%s0 + $0x8] sm:$0xff]
    %v14 = vld [vmem:[%s1] sm:$0x1]
    %16 = vset.pattern.permute.xlu0 0
    %17 = vperm.xlu0 %16, %v12
    %v18 = vpop.permute.xlu0 %17
    %21 = vset.pattern.permute.xlu0 0
    %22 = vperm.xlu0 %21, %v13
    %v23 = vpop.permute.xlu0 %22
    %v26 = vlaneseq
    %v27 = vshrl.u32 %v26, 7
    %v28 = vsub.s32 0, %v27
    %v29 = vrot.slane %v14, %v28
    %v31 = vadd.f32 %v18, %v29
    %v32 = vadd.f32 %v23, %v29
    %vm33 = vcmask 130048
    %34 = vst.msk [vmem:[#allocation2] sm:$0xff] %vm33, %v31
    %35 = vst.msk [vmem:[#allocation2 + $0x8] sm:$0xff] %vm33, %v32
    // Predicated region
    $region10: #{_compute_pe.1} parent=1 // pred_check
      _
    $region11: #{_compute_pe.1} parent=1 // pred_check_branch
      %37 = sbr.rel (0) target = $region13
    $region12: #{_compute_pe.1} parent=1 // pred_region
      %s39 = ssub.s32 256, 256
      %40 = vsyncadd [#allocation3], %s39
      %s41 = sshll.u32 [#allocation2], 4
      %s42 = int_to_ptr.vmem [resolvable:$true] %s41
      %47 = dma.vmem_to_hbm [thread:$0]  %s42, 256, %s2, [#allocation3], 128, 128, 8
    $region13: #{_compute_pe.1} parent=1 // pred_fallthru
      _
    // Predicated region
    $region14: #{_compute_pe.1} parent=1 // pred_check
      _
    $region15: #{_compute_pe.1} parent=1 // pred_check_branch
      %49 = sbr.rel (0) target = $region17
    $region16: #{_compute_pe.1} parent=1 // pred_region
      %50 = dma.done [#allocation3], 256
    $region17: #{_compute_pe.1} parent=1 // pred_fallthru
      _
    %51 = vsyncpa [#allocation3], 1

</llo_original>
